<compile_context>
chip_gen: v5e
topology: v5e:2x2
jax: 0.10.0
libtpu: 0.0.40
codegen_flags: <defaults>
</compile_context>

<pallas_src>
import functools

import jax
import jax.numpy as jnp
from jax.experimental import pallas as pl
from jax.experimental.pallas import tpu as pltpu


def _round_up(x, m):
    return ((x + m - 1) // m) * m


def _cdiv(a, b):
    return -(-a // b)


def _attention_block_kernel(x_ref, w1_ref, b1_ref, w2_ref, b2_ref, o_ref, *, nb):
    # x_ref / o_ref: (NB, C, TM) -- channels on sublanes, spatial positions on lanes.
    w1 = w1_ref[...]      # (Ch, C)  conv1 weight with BN1 + bias folded
    b1 = b1_ref[...]      # (Ch, 1)
    w2 = w2_ref[...]      # (C, Ch)  conv2 weight with BN2 + bias folded
    b2 = b2_ref[...]      # (C, 1)
    for i in range(nb):   # static unroll over the batch block (nb is a Python int)
        xi = x_ref[i].astype(jnp.float32)                              # (C, TM)
        h = jnp.dot(w1, xi, preferred_element_type=jnp.float32) + b1   # conv1 + BN1
        h = jnp.maximum(h, 0.0)                                        # ReLU
        a = jnp.dot(w2, h, preferred_element_type=jnp.float32) + b2    # conv2 + BN2
        # sigmoid(a) == 0.5 * (tanh(a/2) + 1): single EUP op + VPU fma (no divide).
        a = 0.5 * (jnp.tanh(0.5 * a) + 1.0)
        # Gate the input; re-read x from VMEM (vld slot has slack; avoids spilling
        # a large live x across both matmuls at big TM).
        o_ref[i] = (x_ref[i].astype(jnp.float32) * a).astype(o_ref.dtype)


@jax.jit
def attention_block(x_nchw, params):
    """Forward of AttentionBlock (inference BN semantics).  x_nchw: (N, C, H, W)."""
    (w1, b1, g1, be1, rm1, rv1, w2, b2, g2, be2, rm2, rv2) = params
    eps = 1e-5

    N, C, H, W = x_nchw.shape
    assert C >= 8, "in_channels must be >= 8 (hidden channels = C // 8)"
    Ch = w1.shape[0]  # hidden channels = C // 8; w1 is (out=Ch, in=C)

    # Fold BN running stats + conv bias into the weights (inference semantics):
    #   BN(Wx + b) = (s*W) x + (s*(b - rm) + beta),  s = gamma / sqrt(rv + eps)
    s1 = g1 / jnp.sqrt(rv1 + eps)                             # (Ch,)
    w1_eff = (w1 * s1[:, None]).astype(jnp.float32)           # (Ch, C)
    b1_eff = ((s1 * (b1 - rm1) + be1)[:, None]).astype(jnp.float32)   # (Ch, 1)
    s2 = g2 / jnp.sqrt(rv2 + eps)                             # (C,)
    w2_eff = (w2 * s2[:, None]).astype(jnp.float32)           # (C, Ch)
    b2_eff = ((s2 * (b2 - rm2) + be2)[:, None]).astype(jnp.float32)   # (C, 1)

    # NCHW -> (N, C, H*W): contiguous reshape, no HBM transpose traffic.
    HW = H * W
    x_rows = x_nchw.reshape(N, C, HW)

    # ---------- tile selection (generation-aware, no wrapper-side padding) ----------
    elem = x_nchw.dtype.itemsize
    try:
        vmem_cap = int(pltpu.get_tpu_info().vmem_capacity_bytes)
    except Exception:
        vmem_cap = 64 * 1024 * 1024                      # conservative (v7x-sized)
    weight_bytes = 2 * 4 * (2 * Ch * C + Ch + C)         # double-buffered f32 weights/bias
    tile_budget = max(1 << 20, vmem_cap // 2 - weight_bytes)

    col_bytes = 2 * C * elem                             # in + out bytes per spatial column
    max_cols = max(1, tile_budget // (2 * col_bytes))    # 2x: double-buffered tiles
    target_cols = max(1, (8 << 20) // col_bytes)         # aim ~8 MiB HBM traffic / grid step
    cols = min(max_cols, target_cols)

    if HW <= cols:
        tm = HW                                          # full spatial dim: no 128-alignment needed
        nb = max(1, min(N, cols // HW))                  # batch-block small-spatial inputs
    else:
        tm = max(128, (min(cols, HW) // 128) * 128)      # multiple of 128 -> unmasked vst
        nb = 1

    # Guarantee >= 2 grid steps where possible so v7x's two TensorCores both get work.
    if _cdiv(N, nb) * _cdiv(HW, tm) < 2:
        if N >= 2:
            nb = _cdiv(N, 2)
        elif HW >= 256:
            tm = _round_up(_cdiv(HW, 2), 128)

    grid = (_cdiv(N, nb), _cdiv(HW, tm))
    # Ragged last tiles (N % nb, HW % tm) are handled by Pallas boundary masking:
    # OOB lanes are dropped on store, and garbage columns never mix into valid ones
    # (the matmul reduces over C only, which is always full).

    x_spec = pl.BlockSpec((nb, C, tm), lambda n, t: (n, 0, t))
    full = lambda shape: pl.BlockSpec(shape, lambda n, t: (0, 0))

    needed = 2 * (2 * nb * C * tm * elem) + weight_bytes
    vmem_limit = int(min(vmem_cap, max(needed + (8 << 20), 32 << 20)))

    out = pl.pallas_call(
        functools.partial(_attention_block_kernel, nb=nb),
        out_shape=jax.ShapeDtypeStruct((N, C, HW), x_nchw.dtype),
        grid_spec=pltpu.PrefetchScalarGridSpec(
            num_scalar_prefetch=0,
            grid=grid,
            in_specs=[
                x_spec,            # x tile (nb, C, tm)
                full((Ch, C)),     # w1_eff (BN1 + bias folded)
                full((Ch, 1)),     # b1_eff
                full((C, Ch)),     # w2_eff (BN2 + bias folded)
                full((C, 1)),      # b2_eff
            ],
            out_specs=x_spec,
        ),
        compiler_params=pltpu.CompilerParams(
            # Both axes independent -> megacore sharding on v7x's 2 TCs.
            dimension_semantics=("parallel", "parallel"),
            vmem_limit_bytes=vmem_limit,
        ),
    )(x_rows, w1_eff, b1_eff, w2_eff, b2_eff)

    return out.reshape(N, C, H, W)


def init_params(key, in_channels):
    """Deterministic parameter init mirroring the PyTorch module's shapes."""
    hidden = in_channels // 8
    keys = jax.random.split(key, 10)
    # Conv2d weights in PyTorch are (out, in, 1, 1); stored here as (out, in).
    w1 = jax.random.normal(keys[0], (hidden, in_channels), jnp.float32) * 0.1
    b1 = jax.random.normal(keys[1], (hidden,), jnp.float32) * 0.1
    g1 = 1.0 + 0.1 * jax.random.normal(keys[2], (hidden,), jnp.float32)
    be1 = 0.1 * jax.random.normal(keys[3], (hidden,), jnp.float32)
    rm1 = 0.1 * jax.random.normal(keys[4], (hidden,), jnp.float32)
    rv1 = 1.0 + 0.1 * jnp.abs(jax.random.normal(keys[5], (hidden,), jnp.float32))

    w2 = jax.random.normal(keys[6], (in_channels, hidden), jnp.float32) * 0.1
    b2 = jax.random.normal(keys[7], (in_channels,), jnp.float32) * 0.1
    g2 = 1.0 + 0.1 * jax.random.normal(keys[8], (in_channels,), jnp.float32)
    be2 = 0.1 * jax.random.normal(keys[9], (in_channels,), jnp.float32)
    rm2 = jnp.zeros((in_channels,), jnp.float32)
    rv2 = jnp.ones((in_channels,), jnp.float32)
    return (w1, b1, g1, be1, rm1, rv1, w2, b2, g2, be2, rm2, rv2)


def reference(x_nchw, params):
    """Pure-JAX reference (un-folded BN, exact sigmoid) for correctness checking."""
    (w1, b1, g1, be1, rm1, rv1, w2, b2, g2, be2, rm2, rv2) = params
    eps = 1e-5

    def bcast(v):
        return v[None, :, None, None]

    h = jnp.einsum('kc,nchw->nkhw', w1, x_nchw) + bcast(b1)
    h = (h - bcast(rm1)) / bcast(jnp.sqrt(rv1 + eps)) * bcast(g1) + bcast(be1)
    h = jnp.maximum(h, 0.0)
    a = jnp.einsum('ck,nkhw->nchw', w2, h) + bcast(b2)
    a = (a - bcast(rm2)) / bcast(jnp.sqrt(rv2 + eps)) * bcast(g2) + bcast(be2)
    a = jax.nn.sigmoid(a)
    return x_nchw * a


if __name__ == "__main__":
    key = jax.random.PRNGKey(0)
    k_x, k_p = jax.random.split(key)

    # Primary test: batch-blocked path, 128-aligned spatial.
    N, C, H, W = 2, 32, 16, 16                       # in_channels must be >= 8
    x = jax.random.normal(k_x, (N, C, H, W), jnp.float32)
    params = init_params(k_p, C)

    out = jax.block_until_ready(attention_block(x, params))
    ref = reference(x, params)
    assert out.shape == x.shape and out.dtype == x.dtype
    err = float(jnp.max(jnp.abs(out - ref)))
    assert err < 1e-4, err

    # Secondary test: odd, non-128-aligned spatial extent (full-dim tm == H*W path,
    # no padding / slicing anywhere).
    x2 = jax.random.normal(k_x, (1, 16, 7, 9), jnp.float32)
    params2 = init_params(k_p, 16)
    out2 = jax.block_until_ready(attention_block(x2, params2))
    err2 = float(jnp.max(jnp.abs(out2 - reference(x2, params2))))
    assert out2.shape == x2.shape and err2 < 1e-4, err2

    print("KERNEL_OK")
</pallas_src>

<mosaic_0001>
module attributes {stable_mosaic.version = 11 : i64} {
  func.func @_attention_block_kernel(%arg0: i32, %arg1: i32, %arg2: memref<1x32x256xf32, #tpu.memory_space<vmem>>, %arg3: memref<4x32xf32, #tpu.memory_space<vmem>>, %arg4: memref<4x1xf32, #tpu.memory_space<vmem>>, %arg5: memref<32x4xf32, #tpu.memory_space<vmem>>, %arg6: memref<32x1xf32, #tpu.memory_space<vmem>>, %arg7: memref<1x32x256xf32, #tpu.memory_space<vmem>>) attributes {dimension_semantics = [#tpu.dimension_semantics<parallel>, #tpu.dimension_semantics<parallel>], iteration_bounds = array<i64: 2, 1>, scalar_prefetch = 0 : i64, scratch_operands = 0 : i64, tpu.core_type = #tpu.core_type<tc>, window_params = [{transform_indices = @transform_0, window_bounds = array<i64: 1, 32, 256>}, {pipeline_mode = #tpu.pipeline_mode<synchronous>, transform_indices = @transform_1, window_bounds = array<i64: 4, 32>}, {pipeline_mode = #tpu.pipeline_mode<synchronous>, transform_indices = @transform_2, window_bounds = array<i64: 4, 1>}, {pipeline_mode = #tpu.pipeline_mode<synchronous>, transform_indices = @transform_3, window_bounds = array<i64: 32, 4>}, {pipeline_mode = #tpu.pipeline_mode<synchronous>, transform_indices = @transform_4, window_bounds = array<i64: 32, 1>}, {transform_indices = @transform_5, window_bounds = array<i64: 1, 32, 256>}]} {
    %c0 = arith.constant 0 : index
    %c0_0 = arith.constant 0 : index
    %0 = vector.load %arg3[%c0, %c0_0] : memref<4x32xf32, #tpu.memory_space<vmem>>, vector<4x32xf32>
    %c0_1 = arith.constant 0 : index
    %c0_2 = arith.constant 0 : index
    %1 = vector.load %arg4[%c0_1, %c0_2] : memref<4x1xf32, #tpu.memory_space<vmem>>, vector<4x1xf32>
    %c0_3 = arith.constant 0 : index
    %c0_4 = arith.constant 0 : index
    %2 = vector.load %arg5[%c0_3, %c0_4] : memref<32x4xf32, #tpu.memory_space<vmem>>, vector<32x4xf32>
    %c0_5 = arith.constant 0 : index
    %c0_6 = arith.constant 0 : index
    %3 = vector.load %arg6[%c0_5, %c0_6] : memref<32x1xf32, #tpu.memory_space<vmem>>, vector<32x1xf32>
    %c0_7 = arith.constant 0 : index
    %c0_8 = arith.constant 0 : index
    %c0_9 = arith.constant 0 : index
    %4 = vector.load %arg2[%c0_7, %c0_8, %c0_9] : memref<1x32x256xf32, #tpu.memory_space<vmem>>, vector<1x32x256xf32>
    %5 = vector.shape_cast %4 : vector<1x32x256xf32> to vector<32x256xf32>
    %cst = arith.constant dense<0.000000e+00> : vector<4x256xf32>
    %6 = tpu.matmul %0, %5, %cst {dimension_numbers = #tpu.dot_dimension_numbers<[1], [0], [0], [1], [0, 0, 1, 1], [], []>} : vector<4x32xf32>, vector<32x256xf32>, vector<4x256xf32> -> vector<4x256xf32>
    %7 = vector.broadcast %1 : vector<4x1xf32> to vector<4x256xf32>
    %8 = arith.addf %6, %7 : vector<4x256xf32>
    %cst_10 = arith.constant 0.000000e+00 : f32
    %9 = vector.broadcast %cst_10 : f32 to vector<4x256xf32>
    %10 = arith.maximumf %8, %9 : vector<4x256xf32>
    %cst_11 = arith.constant dense<0.000000e+00> : vector<32x256xf32>
    %11 = tpu.matmul %2, %10, %cst_11 {dimension_numbers = #tpu.dot_dimension_numbers<[1], [0], [0], [1], [0, 0, 1, 1], [], []>} : vector<32x4xf32>, vector<4x256xf32>, vector<32x256xf32> -> vector<32x256xf32>
    %12 = vector.broadcast %3 : vector<32x1xf32> to vector<32x256xf32>
    %13 = arith.addf %11, %12 : vector<32x256xf32>
    %cst_12 = arith.constant 5.000000e-01 : f32
    %14 = vector.broadcast %cst_12 : f32 to vector<32x256xf32>
    %15 = arith.mulf %14, %13 : vector<32x256xf32>
    %16 = math.tanh %15 : vector<32x256xf32>
    %cst_13 = arith.constant 1.000000e+00 : f32
    %17 = vector.broadcast %cst_13 : f32 to vector<32x256xf32>
    %18 = arith.addf %16, %17 : vector<32x256xf32>
    %cst_14 = arith.constant 5.000000e-01 : f32
    %19 = vector.broadcast %cst_14 : f32 to vector<32x256xf32>
    %20 = arith.mulf %19, %18 : vector<32x256xf32>
    %c0_15 = arith.constant 0 : index
    %c0_16 = arith.constant 0 : index
    %c0_17 = arith.constant 0 : index
    %21 = vector.load %arg2[%c0_15, %c0_16, %c0_17] : memref<1x32x256xf32, #tpu.memory_space<vmem>>, vector<1x32x256xf32>
    %22 = vector.shape_cast %21 : vector<1x32x256xf32> to vector<32x256xf32>
    %23 = arith.mulf %22, %20 : vector<32x256xf32>
    %c0_18 = arith.constant 0 : index
    %c0_19 = arith.constant 0 : index
    %c0_20 = arith.constant 0 : index
    %24 = vector.load %arg7[%c0_18, %c0_19, %c0_20] : memref<1x32x256xf32, #tpu.memory_space<vmem>>, vector<1x32x256xf32>
    %25 = vector.shape_cast %24 : vector<1x32x256xf32> to vector<32x256xf32>
    %26 = vector.shape_cast %23 : vector<32x256xf32> to vector<1x32x256xf32>
    tpu.vector_store %arg7[%c0_18, %c0_19, %c0_20], %26 {strides = array<i32>} : memref<1x32x256xf32, #tpu.memory_space<vmem>>, vector<1x32x256xf32>,
    return
  }
  func.func @transform_0(%arg0: i32, %arg1: i32) -> (i32, i32, i32) {
    %c0_i32 = arith.constant 0 : i32
    %c0_i32_0 = arith.constant 0 : i32
    return %arg0, %c0_i32, %arg1 : i32, i32, i32
  }
  func.func @transform_1(%arg0: i32, %arg1: i32) -> (i32, i32) {
    %c0_i32 = arith.constant 0 : i32
    %c0_i32_0 = arith.constant 0 : i32
    %c0_i32_1 = arith.constant 0 : i32
    return %c0_i32, %c0_i32_0 : i32, i32
  }
  func.func @transform_2(%arg0: i32, %arg1: i32) -> (i32, i32) {
    %c0_i32 = arith.constant 0 : i32
    %c0_i32_0 = arith.constant 0 : i32
    %c0_i32_1 = arith.constant 0 : i32
    return %c0_i32, %c0_i32_0 : i32, i32
  }
  func.func @transform_3(%arg0: i32, %arg1: i32) -> (i32, i32) {
    %c0_i32 = arith.constant 0 : i32
    %c0_i32_0 = arith.constant 0 : i32
    %c0_i32_1 = arith.constant 0 : i32
    return %c0_i32, %c0_i32_0 : i32, i32
  }
  func.func @transform_4(%arg0: i32, %arg1: i32) -> (i32, i32) {
    %c0_i32 = arith.constant 0 : i32
    %c0_i32_0 = arith.constant 0 : i32
    %c0_i32_1 = arith.constant 0 : i32
    return %c0_i32, %c0_i32_0 : i32, i32
  }
  func.func @transform_5(%arg0: i32, %arg1: i32) -> (i32, i32, i32) {
    %c0_i32 = arith.constant 0 : i32
    %c0_i32_0 = arith.constant 0 : i32
    return %arg0, %c0_i32, %arg1 : i32, i32, i32
  }
}

</mosaic_0001>

<llo_original>
// kernel: attention_block.1
$region0: #{attention_block.1}
  #allocation0 [shape = 'u32[]', space=smem, size = 0x4, offset = 0x4, fixed_abs, tag = 'smem constant byte address 0x4 - core index']
  #allocation1 [shape = 'u32[72,128]{1,0:T(1,128)}', space=vmem, size = 0x9000, scoped, tag = 'internal scratch']
  %s0 = inlined_call_operand.vmem [shape: f32[2,32,256], index: 0, kind: input, shape index: {}]
  %s1 = inlined_call_operand.vmem [shape: f32[4,32], index: 1, kind: input, shape index: {}]
  %s2 = inlined_call_operand.vmem [shape: f32[4,1], index: 2, kind: input, shape index: {}]
  %s3 = inlined_call_operand.vmem [shape: f32[32,4], index: 3, kind: input, shape index: {}]
  %s4 = inlined_call_operand.vmem [shape: f32[32,1], index: 4, kind: input, shape index: {}]
  %s5 = inlined_call_operand.vmem [shape: f32[2,32,256], index: 5, kind: output, shape index: {}]
  %s6 = sld [smem:[#allocation0]]
  $region53: #{attention_block.1} parent=0
    _
  %s8 = ssub.s32 1, %s6
  %s9 = scalar_select 0, %s8, %s6
  loop: start=0, step=1, limit=4
  $region2: #{attention_block.1} parent=0 // loop_pre_header
    _
  $region3: #{attention_block.1} parent=0 // loop_header
    %s11 = sphi 0, %s15
    %p12 = scmp.ge.s32.totalorder %s11, 4
    %s18 = sphi 0, %s30
    %s19 = sphi 0, %s26
    %s20 = sphi 0, %s18
    %s21 = sphi 0, %s19
    %s22 = sphi 0, %s20
    %s23 = sphi 0, %s21
    %s35 = sphi 0, %s37
    %s38 = sphi 0, %s35
    %s39 = sphi 0, %s38
    %s55 = sphi 0, %s39
    %s59 = sphi 0, %s59
    %s61 = sphi 0, %s59
    %s62 = sphi 0, %s61
    %s76 = sphi 0, %s62
    %s80 = sphi 0, %s80
    %s82 = sphi 0, %s80
    %s83 = sphi 0, %s82
    %s97 = sphi 0, %s83
    %s101 = sphi 0, %s101
    %s103 = sphi 0, %s101
    %s104 = sphi 0, %s103
    %s118 = sphi 0, %s104
    %s122 = sphi 0, %s122
    %s124 = sphi 0, %s122
    %s125 = sphi 0, %s124
    %s139 = sphi 0, %s125
    %s147 = sphi 0, %s149
    %s150 = sphi 0, %s147
    %s151 = sphi 0, %s150
    %s167 = sphi 0, %s151
  $region4: #{attention_block.1} parent=0 // loop_header_branch
    %14 = sbr.rel (%p12) target = $region8
  $region5: #{attention_block.1} parent=0 // loop_body
    %s16 = ssub.s32 %s11, 1
    %s17 = ssub.s32 %s11, 2
    %s24 = sadd.s32 1, %s19
    %p25 = scmp.ge.s32.totalorder %s24, 1
    %s26 = scalar_select %p25, 0, %s24
    %s27 = sadd.s32 1, %s18
    %s28 = scalar_select %p25, %s27, %s18
    %p29 = scmp.ge.s32.totalorder %s28, 2
    %s30 = scalar_select %p29, 0, %s28
    %s31 = ssub.s32 %s18, %s30
    %s32 = ssub.s32 %s19, %s26
    %s33 = sor.u32 %s31, %s32
    %p34 = scmp.eq.s32.totalorder %s33, 0
    %s36 = sadd.s32 %s35, 1
    %s37 = scalar_select %p34, %s35, %s36
    %p40 = pneg %p34
    %p41 = scmp.eq.s32.totalorder %s11, 1
    %p42 = por %p40, %p41
    %p43 = scmp.ne.s32.totalorder %s35, %s38
    %p44 = scmp.eq.s32.totalorder %s11, 0
    %p45 = por %p43, %p44
    %p46 = scmp.ne.s32.totalorder %s35, %s38
    %p47 = scmp.eq.s32.totalorder %s16, 1
    %p48 = por %p46, %p47
    %p49 = scmp.ne.s32.totalorder %s38, %s39
    %p50 = scmp.eq.s32.totalorder %s16, 0
    %p51 = por %p49, %p50
    %p52 = scmp.ne.s32.totalorder %s38, %s39
    %p53 = scmp.eq.s32.totalorder %s17, 1
    %p54 = por %p52, %p53
    %p56 = scmp.ne.s32.totalorder %s39, %s55
    %p57 = scmp.eq.s32.totalorder %s17, 0
    %p58 = por %p56, %p57
    %s60 = sadd.s32 %s59, 1
    %p63 = scmp.eq.s32.totalorder %s11, 1
    %p64 = scmp.ne.s32.totalorder %s59, %s61
    %p65 = scmp.eq.s32.totalorder %s11, 0
    %p66 = por %p64, %p65
    %p67 = scmp.ne.s32.totalorder %s59, %s61
    %p68 = scmp.eq.s32.totalorder %s16, 1
    %p69 = por %p67, %p68
    %p70 = scmp.ne.s32.totalorder %s61, %s62
    %p71 = scmp.eq.s32.totalorder %s16, 0
    %p72 = por %p70, %p71
    %p73 = scmp.ne.s32.totalorder %s61, %s62
    %p74 = scmp.eq.s32.totalorder %s17, 1
    %p75 = por %p73, %p74
    %p77 = scmp.ne.s32.totalorder %s62, %s76
    %p78 = scmp.eq.s32.totalorder %s17, 0
    %p79 = por %p77, %p78
    %s81 = sadd.s32 %s80, 1
    %p84 = scmp.eq.s32.totalorder %s11, 1
    %p85 = scmp.ne.s32.totalorder %s80, %s82
    %p86 = scmp.eq.s32.totalorder %s11, 0
    %p87 = por %p85, %p86
    %p88 = scmp.ne.s32.totalorder %s80, %s82
    %p89 = scmp.eq.s32.totalorder %s16, 1
    %p90 = por %p88, %p89
    %p91 = scmp.ne.s32.totalorder %s82, %s83
    %p92 = scmp.eq.s32.totalorder %s16, 0
    %p93 = por %p91, %p92
    %p94 = scmp.ne.s32.totalorder %s82, %s83
    %p95 = scmp.eq.s32.totalorder %s17, 1
    %p96 = por %p94, %p95
    %p98 = scmp.ne.s32.totalorder %s83, %s97
    %p99 = scmp.eq.s32.totalorder %s17, 0
    %p100 = por %p98, %p99
    %s102 = sadd.s32 %s101, 1
    %p105 = scmp.eq.s32.totalorder %s11, 1
    %p106 = scmp.ne.s32.totalorder %s101, %s103
    %p107 = scmp.eq.s32.totalorder %s11, 0
    %p108 = por %p106, %p107
    %p109 = scmp.ne.s32.totalorder %s101, %s103
    %p110 = scmp.eq.s32.totalorder %s16, 1
    %p111 = por %p109, %p110
    %p112 = scmp.ne.s32.totalorder %s103, %s104
    %p113 = scmp.eq.s32.totalorder %s16, 0
    %p114 = por %p112, %p113
    %p115 = scmp.ne.s32.totalorder %s103, %s104
    %p116 = scmp.eq.s32.totalorder %s17, 1
    %p117 = por %p115, %p116
    %p119 = scmp.ne.s32.totalorder %s104, %s118
    %p120 = scmp.eq.s32.totalorder %s17, 0
    %p121 = por %p119, %p120
    %s123 = sadd.s32 %s122, 1
    %p126 = scmp.eq.s32.totalorder %s11, 1
    %p127 = scmp.ne.s32.totalorder %s122, %s124
    %p128 = scmp.eq.s32.totalorder %s11, 0
    %p129 = por %p127, %p128
    %p130 = scmp.ne.s32.totalorder %s122, %s124
    %p131 = scmp.eq.s32.totalorder %s16, 1
    %p132 = por %p130, %p131
    %p133 = scmp.ne.s32.totalorder %s124, %s125
    %p134 = scmp.eq.s32.totalorder %s16, 0
    %p135 = por %p133, %p134
    %p136 = scmp.ne.s32.totalorder %s124, %s125
    %p137 = scmp.eq.s32.totalorder %s17, 1
    %p138 = por %p136, %p137
    %p140 = scmp.ne.s32.totalorder %s125, %s139
    %p141 = scmp.eq.s32.totalorder %s17, 0
    %p142 = por %p140, %p141
    %s143 = ssub.s32 %s18, %s30
    %s144 = ssub.s32 %s19, %s26
    %s145 = sor.u32 %s143, %s144
    %p146 = scmp.eq.s32.totalorder %s145, 0
    %s148 = sadd.s32 %s147, 1
    %s149 = scalar_select %p146, %s147, %s148
    %p152 = pneg %p146
    %p153 = scmp.eq.s32.totalorder %s11, 1
    %p154 = por %p152, %p153
    %p155 = scmp.ne.s32.totalorder %s147, %s150
    %p156 = scmp.eq.s32.totalorder %s11, 0
    %p157 = por %p155, %p156
    %p158 = scmp.ne.s32.totalorder %s147, %s150
    %p159 = scmp.eq.s32.totalorder %s16, 1
    %p160 = por %p158, %p159
    %p161 = scmp.ne.s32.totalorder %s150, %s151
    %p162 = scmp.eq.s32.totalorder %s16, 0
    %p163 = por %p161, %p162
    %p164 = scmp.ne.s32.totalorder %s150, %s151
    %p165 = scmp.eq.s32.totalorder %s17, 1
    %p166 = por %p164, %p165
    %p168 = scmp.ne.s32.totalorder %s151, %s167
    %p169 = scmp.eq.s32.totalorder %s17, 0
    %p170 = por %p168, %p169
    %p171 = scmp.le.s32.totalorder 1, %s11
    %p172 = scmp.lt.s32.totalorder %s11, 3
    %p173 = pnand %p171, %p172
    %p174 = pneg %p173
    // Predicated region
    $region9: #{attention_block.1} parent=5 // pred_check
      _
    $region10: #{attention_block.1} parent=5 // pred_check_branch
      %176 = sbr.rel (%p173) target = $region12
    $region11: #{attention_block.1} parent=5 // pred_region
      %s177 = ssub.s32 %s11, 1
      // Predicated region
      $region13: #{attention_block.1} parent=11 // pred_check
        %p178 = pneg %p72
      $region14: #{attention_block.1} parent=11 // pred_check_branch
        %180 = sbr.rel (%p178) target = $region16
      $region15: #{attention_block.1} parent=11 // pred_region
        _
      $region16: #{attention_block.1} parent=11 // pred_fallthru
        _
      // Predicated region
      $region17: #{attention_block.1} parent=11 // pred_check
        %p181 = pneg %p93
      $region18: #{attention_block.1} parent=11 // pred_check_branch
        %183 = sbr.rel (%p181) target = $region20
      $region19: #{attention_block.1} parent=11 // pred_region
        _
      $region20: #{attention_block.1} parent=11 // pred_fallthru
        _
      // Predicated region
      $region21: #{attention_block.1} parent=11 // pred_check
        %p184 = pneg %p114
      $region22: #{attention_block.1} parent=11 // pred_check_branch
        %186 = sbr.rel (%p184) target = $region24
      $region23: #{attention_block.1} parent=11 // pred_region
        _
      $region24: #{attention_block.1} parent=11 // pred_fallthru
        _
      // Predicated region
      $region25: #{attention_block.1} parent=11 // pred_check
        %p187 = pneg %p135
      $region26: #{attention_block.1} parent=11 // pred_check_branch
        %189 = sbr.rel (%p187) target = $region28
      $region27: #{attention_block.1} parent=11 // pred_region
        _
      $region28: #{attention_block.1} parent=11 // pred_fallthru
        _
    $region12: #{attention_block.1} parent=5 // pred_fallthru
      _
    %p190 = scmp.lt.s32.totalorder %s11, 2
    // Predicated region
    $region29: #{attention_block.1} parent=5 // pred_check
      %p191 = pneg %p190
    $region30: #{attention_block.1} parent=5 // pred_check_branch
      %193 = sbr.rel (%p191) target = $region32
    $region31: #{attention_block.1} parent=5 // pred_region
      // Predicated region
      $region33: #{attention_block.1} parent=31 // pred_check
        %p194 = pneg %p45
      $region34: #{attention_block.1} parent=31 // pred_check_branch
        %196 = sbr.rel (%p194) target = $region36
      $region35: #{attention_block.1} parent=31 // pred_region
        %s197 = smul.u32 2, %s19
        %p198 = scmp.lt.s32.totalorder %s18, 1
        %s199 = scalar_select %p198, %s18, 1
        %p200 = scmp.lt.s32.totalorder %s197, 1
        %s201 = scalar_select %p200, %s197, 1
        %s202 = smul.addr %s199, 8
        %s203 = sadd.s32 %s201, %s202
        %s204 = smul.addr %s203, 8
        %s205 = scalar_lea.vmem %s0, %s204
        %s206 = smul.u32 2, %s19
      $region36: #{attention_block.1} parent=31 // pred_fallthru
        _
    $region32: #{attention_block.1} parent=5 // pred_fallthru
      _
    %p207 = scmp.le.s32.totalorder 1, %s11
    %p208 = scmp.lt.s32.totalorder %s11, 3
    %p209 = pnand %p207, %p208
    %p210 = pneg %p209
    // Predicated region
    $region37: #{attention_block.1} parent=5 // pred_check
      _
    $region38: #{attention_block.1} parent=5 // pred_check_branch
      %212 = sbr.rel (%p209) target = $region40
    $region39: #{attention_block.1} parent=5 // pred_region
      %s213 = ssub.s32 %s11, 1
      %s214 = smul.u32 2, %s21
      %p215 = scmp.lt.s32.totalorder %s20, 1
      %s216 = scalar_select %p215, %s20, 1
      %p217 = scmp.lt.s32.totalorder %s214, 1
      %s218 = scalar_select %p217, %s214, 1
      %s219 = smul.addr %s216, 8
      %s220 = sadd.s32 %s218, %s219
      %s221 = smul.addr %s220, 8
      %s222 = scalar_lea.vmem %s0, %s221
      %p223 = pneg %p51
      %p224 = pneg %p48
      %p225 = pneg %p72
      %p226 = pneg %p69
      %p227 = pneg %p93
      %p228 = pneg %p90
      %p229 = pneg %p114
      %p230 = pneg %p111
      %p231 = pneg %p135
      %p232 = pneg %p132
      %p233 = pneg %p163
      %p234 = pneg %p160
      %s235 = smul.u32 2, %s21
      %p236 = scmp.lt.s32.totalorder %s20, 1
      %s237 = scalar_select %p236, %s20, 1
      %p238 = scmp.lt.s32.totalorder %s235, 1
      %s239 = scalar_select %p238, %s235, 1
      %s240 = smul.addr %s237, 8
      %s241 = sadd.s32 %s239, %s240
      %s242 = smul.addr %s241, 8
      %s243 = scalar_lea.vmem %s5, %s242
      %s244 = smul.u32 2, %s21
      %p245 = scmp.lt.s32.totalorder %s20, 1
      %s246 = scalar_select %p245, %s20, 1
      %p247 = scmp.lt.s32.totalorder %s244, 1
      %s248 = scalar_select %p247, %s244, 1
      %s249 = smul.addr %s246, 8
      %s250 = sadd.s32 %s248, %s249
      %s251 = smul.addr %s250, 8
      %s252 = scalar_lea.vmem %s0, %s251
      %s253 = smul.u32 2, %s21
      %s254 = smul.u32 2, %s21
      %p255 = scmp.lt.s32.totalorder %s20, 1
      %s256 = scalar_select %p255, %s20, 1
      %p257 = scmp.lt.s32.totalorder %s254, 1
      %s258 = scalar_select %p257, %s254, 1
      %s259 = smul.addr %s256, 8
      %s260 = sadd.s32 %s258, %s259
      %s261 = smul.addr %s260, 8
      %s262 = scalar_lea.vmem %s5, %s261
      %s263 = smul.u32 2, %s21
      %v264 = vld [vmem:[%s1] sm:$0xf]
      %v265 = vld [vmem:[%s2] sm:$0xf]
      %v266 = vld [vmem:[%s3] sm:$0xff]
      %v267 = vld [vmem:[%s3 + $0x8] sm:$0xff]
      %v268 = vld [vmem:[%s3 + $0x10] sm:$0xff]
      %v269 = vld [vmem:[%s3 + $0x18] sm:$0xff]
      %v270 = vld [vmem:[%s4] sm:$0xff]
      %v271 = vld [vmem:[%s4 + $0x8] sm:$0xff]
      %v272 = vld [vmem:[%s4 + $0x10] sm:$0xff]
      %v273 = vld [vmem:[%s4 + $0x18] sm:$0xff]
      %v274 = vld [vmem:[%s252] sm:$0xff]
      %v275 = vld [vmem:[%s252 + $0x8] sm:$0xff]
      %v276 = vld [vmem:[%s252 + $0x10] sm:$0xff]
      %v277 = vld [vmem:[%s252 + $0x18] sm:$0xff]
      %v278 = vld [vmem:[%s252 + $0x20] sm:$0xff]
      %v279 = vld [vmem:[%s252 + $0x28] sm:$0xff]
      %v280 = vld [vmem:[%s252 + $0x30] sm:$0xff]
      %v281 = vld [vmem:[%s252 + $0x38] sm:$0xff]
      %283 = vset.pattern.permute.xlu0 0
      %284 = vperm.xlu0 %283, %v265
      %v285 = vpop.permute.xlu0 %284
      %vm287 = vcmask 261120
      %v289 = vsel %vm287, %v264, 0
      %291 = vmatpush.msra.mxu0 0.0
      %292 = vmatpush.msra.mxu0 0.0
      %293 = vmatpush.msra.mxu0 0.0
      %294 = vmatpush.msra.mxu0 0.0
      %295 = vmatpush.msra.mxu0 0.0
      %296 = vmatpush.msra.mxu0 0.0
      %297 = vmatpush.msra.mxu0 0.0
      %298 = vmatpush.msra.mxu0 0.0
      %299 = vmatpush.msra.mxu0 0.0
      %300 = vmatpush.msra.mxu0 0.0
      %301 = vmatpush.msra.mxu0 0.0
      %302 = vmatpush.msra.mxu0 0.0
      %303 = vmatpush.msra.mxu0 %v280
      %304 = vmatpush.msra.mxu0 %v278
      %305 = vmatpush.msra.mxu0 %v276
      %306 = vmatpush.msra.mxu0 %v274
      %307 = vmatmul.f32.gmra.mxu0 %v289
      %v308 = vpop.f32.mrf.mxu0
      %v309 = vadd.f32 %v285, %v308
      %310 = vdwg.mxu0
      %311 = vmatpush.msra.mxu0 0.0
      %312 = vmatpush.msra.mxu0 0.0
      %313 = vmatpush.msra.mxu0 0.0
      %314 = vmatpush.msra.mxu0 0.0
      %315 = vmatpush.msra.mxu0 0.0
      %316 = vmatpush.msra.mxu0 0.0
      %317 = vmatpush.msra.mxu0 0.0
      %318 = vmatpush.msra.mxu0 0.0
      %319 = vmatpush.msra.mxu0 0.0
      %320 = vmatpush.msra.mxu0 0.0
      %321 = vmatpush.msra.mxu0 0.0
      %322 = vmatpush.msra.mxu0 0.0
      %323 = vmatpush.msra.mxu0 %v281
      %324 = vmatpush.msra.mxu0 %v279
      %325 = vmatpush.msra.mxu0 %v277
      %326 = vmatpush.msra.mxu0 %v275
      %327 = vmatmul.f32.gmra.mxu0 %v289
      %v328 = vpop.f32.mrf.mxu0
      %v329 = vadd.f32 %v285, %v328
      %330 = vdwg.mxu0
      %v331 = vmax.f32 %v309, 0.0
      %v332 = vmax.f32 %v329, 0.0
      %334 = vset.pattern.permute.xlu0 0
      %335 = vperm.xlu0 %334, %v270
      %v336 = vpop.permute.xlu0 %335
      %339 = vset.pattern.permute.xlu0 0
      %340 = vperm.xlu0 %339, %v271
      %v341 = vpop.permute.xlu0 %340
      %344 = vset.pattern.permute.xlu0 0
      %345 = vperm.xlu0 %344, %v272
      %v346 = vpop.permute.xlu0 %345
      %349 = vset.pattern.permute.xlu0 0
      %350 = vperm.xlu0 %349, %v273
      %v351 = vpop.permute.xlu0 %350
      %vm353 = vcmask 31744
      %v355 = vsel %vm353, %v266, 0
      %v358 = vsel %vm353, %v267, 0
      %v361 = vsel %vm353, %v268, 0
      %v364 = vsel %vm353, %v269, 0
      %vm366 = vcmask 1043456
      %v368 = vsel %vm366, %v331, 0
      %v371 = vsel %vm366, %v332, 0
      %373 = vmatpush.msra.mxu0 0.0
      %374 = vmatpush.msra.mxu0 0.0
      %375 = vmatpush.msra.mxu0 0.0
      %376 = vmatpush.msra.mxu0 0.0
      %377 = vmatpush.msra.mxu0 0.0
      %378 = vmatpush.msra.mxu0 0.0
      %379 = vmatpush.msra.mxu0 0.0
      %380 = vmatpush.msra.mxu0 0.0
      %381 = vmatpush.msra.mxu0 0.0
      %382 = vmatpush.msra.mxu0 0.0
      %383 = vmatpush.msra.mxu0 0.0
      %384 = vmatpush.msra.mxu0 0.0
      %385 = vmatpush.msra.mxu0 0.0
      %386 = vmatpush.msra.mxu0 0.0
      %387 = vmatpush.msra.mxu0 0.0
      %388 = vmatpush.msra.mxu0 %v368
      %389 = vmatmul.f32.gmra.mxu0 %v355
      %v390 = vpop.f32.mrf.mxu0
      %v391 = vadd.f32 %v336, %v390
      %392 = vmatmul.f32.gmra.mxu0 %v358
      %v393 = vpop.f32.mrf.mxu0
      %v394 = vadd.f32 %v341, %v393
      %395 = vmatmul.f32.gmra.mxu0 %v361
      %v396 = vpop.f32.mrf.mxu0
      %v397 = vadd.f32 %v346, %v396
      %398 = vmatmul.f32.gmra.mxu0 %v364
      %v399 = vpop.f32.mrf.mxu0
      %v400 = vadd.f32 %v351, %v399
      %401 = vdwg.mxu0
      %402 = vmatpush.msra.mxu0 0.0
      %403 = vmatpush.msra.mxu0 0.0
      %404 = vmatpush.msra.mxu0 0.0
      %405 = vmatpush.msra.mxu0 0.0
      %406 = vmatpush.msra.mxu0 0.0
      %407 = vmatpush.msra.mxu0 0.0
      %408 = vmatpush.msra.mxu0 0.0
      %409 = vmatpush.msra.mxu0 0.0
      %410 = vmatpush.msra.mxu0 0.0
      %411 = vmatpush.msra.mxu0 0.0
      %412 = vmatpush.msra.mxu0 0.0
      %413 = vmatpush.msra.mxu0 0.0
      %414 = vmatpush.msra.mxu0 0.0
      %415 = vmatpush.msra.mxu0 0.0
      %416 = vmatpush.msra.mxu0 0.0
      %417 = vmatpush.msra.mxu0 %v371
      %418 = vmatmul.f32.gmra.mxu0 %v355
      %v419 = vpop.f32.mrf.mxu0
      %v420 = vadd.f32 %v336, %v419
      %421 = vmatmul.f32.gmra.mxu0 %v358
      %v422 = vpop.f32.mrf.mxu0
      %v423 = vadd.f32 %v341, %v422
      %424 = vmatmul.f32.gmra.mxu0 %v361
      %v425 = vpop.f32.mrf.mxu0
      %v426 = vadd.f32 %v346, %v425
      %427 = vmatmul.f32.gmra.mxu0 %v364
      %v428 = vpop.f32.mrf.mxu0
      %v429 = vadd.f32 %v351, %v428
      %430 = vdwg.mxu0
      %v431 = vmul.f32 %v391, 0.5
      %v432 = vmul.f32 %v420, 0.5
      %v433 = vmul.f32 %v394, 0.5
      %v434 = vmul.f32 %v423, 0.5
      %v435 = vmul.f32 %v397, 0.5
      %v436 = vmul.f32 %v426, 0.5
      %v437 = vmul.f32 %v400, 0.5
      %v438 = vmul.f32 %v429, 0.5
      %v439 = vtanh.pop %v431
      %v440 = vtanh.pop %v432
      %v441 = vtanh.pop %v433
      %v442 = vtanh.pop %v434
      %v443 = vtanh.pop %v435
      %v444 = vtanh.pop %v436
      %v445 = vtanh.pop %v437
      %v446 = vtanh.pop %v438
      %v447 = vadd.f32 %v439, 1.0
      %v448 = vadd.f32 %v440, 1.0
      %v449 = vadd.f32 %v441, 1.0
      %v450 = vadd.f32 %v442, 1.0
      %v451 = vadd.f32 %v443, 1.0
      %v452 = vadd.f32 %v444, 1.0
      %v453 = vadd.f32 %v445, 1.0
      %v454 = vadd.f32 %v446, 1.0
      %v455 = vmul.f32 %v447, 0.5
      %v456 = vmul.f32 %v448, 0.5
      %v457 = vmul.f32 %v449, 0.5
      %v458 = vmul.f32 %v450, 0.5
      %v459 = vmul.f32 %v451, 0.5
      %v460 = vmul.f32 %v452, 0.5
      %v461 = vmul.f32 %v453, 0.5
      %v462 = vmul.f32 %v454, 0.5
      %v463 = vmul.f32 %v274, %v455
      %v464 = vmul.f32 %v275, %v456
      %v465 = vmul.f32 %v276, %v457
      %v466 = vmul.f32 %v277, %v458
      %v467 = vmul.f32 %v278, %v459
      %v468 = vmul.f32 %v279, %v460
      %v469 = vmul.f32 %v280, %v461
      %v470 = vmul.f32 %v281, %v462
      %471 = vst [vmem:[%s262] sm:$0xff] %v463
      %472 = vst [vmem:[%s262 + $0x8] sm:$0xff] %v464
      %473 = vst [vmem:[%s262 + $0x10] sm:$0xff] %v465
      %474 = vst [vmem:[%s262 + $0x18] sm:$0xff] %v466
      %475 = vst [vmem:[%s262 + $0x20] sm:$0xff] %v467
      %476 = vst [vmem:[%s262 + $0x28] sm:$0xff] %v468
      %477 = vst [vmem:[%s262 + $0x30] sm:$0xff] %v469
      %478 = vst [vmem:[%s262 + $0x38] sm:$0xff] %v470
      %s479 = smul.u32 2, %s21
      %p480 = scmp.lt.s32.totalorder %s20, 1
      %s481 = scalar_select %p480, %s20, 1
      %p482 = scmp.lt.s32.totalorder %s479, 1
      %s483 = scalar_select %p482, %s479, 1
      %s484 = smul.addr %s481, 8
      %s485 = sadd.s32 %s483, %s484
      %s486 = smul.addr %s485, 8
      %s487 = scalar_lea.vmem %s5, %s486
      // Predicated region
      $region41: #{attention_block.1} parent=39 // pred_check
        %p488 = pneg %p160
      $region42: #{attention_block.1} parent=39 // pred_check_branch
        %490 = sbr.rel (%p488) target = $region44
      $region43: #{attention_block.1} parent=39 // pred_region
        %s491 = smul.u32 2, %s21
      $region44: #{attention_block.1} parent=39 // pred_fallthru
        _
    $region40: #{attention_block.1} parent=5 // pred_fallthru
      _
    %p492 = scmp.le.s32.totalorder 2, %s11
    // Predicated region
    $region45: #{attention_block.1} parent=5 // pred_check
      %p493 = pneg %p492
    $region46: #{attention_block.1} parent=5 // pred_check_branch
      %495 = sbr.rel (%p493) target = $region48
    $region47: #{attention_block.1} parent=5 // pred_region
      %s496 = ssub.s32 %s11, 2
      // Predicated region
      $region49: #{attention_block.1} parent=47 // pred_check
        %p497 = pneg %p166
      $region50: #{attention_block.1} parent=47 // pred_check_branch
        %499 = sbr.rel (%p497) target = $region52
      $region51: #{attention_block.1} parent=47 // pred_region
        %s500 = smul.u32 2, %s23
        %p501 = scmp.lt.s32.totalorder %s22, 1
        %s502 = scalar_select %p501, %s22, 1
        %p503 = scmp.lt.s32.totalorder %s500, 1
        %s504 = scalar_select %p503, %s500, 1
        %s505 = smul.addr %s502, 8
        %s506 = sadd.s32 %s504, %s505
        %s507 = smul.addr %s506, 8
        %s508 = scalar_lea.vmem %s5, %s507
      $region52: #{attention_block.1} parent=47 // pred_fallthru
        _
    $region48: #{attention_block.1} parent=5 // pred_fallthru
      _
  $region6: #{attention_block.1} parent=0 // loop_footer
    %s15 = sadd.s32 1, %s11
  $region7: #{attention_block.1} parent=0 // loop_footer_branch
    %10 = sbr.rel target = $region3
  $region8: #{attention_block.1} parent=0 // loop_exit
    _

</llo_original>
